<compile_context>
chip_gen: v7x
topology: tpu7x:2x2x1
jax: 0.10.0
libtpu: 0.0.40
codegen_flags: <defaults>
</compile_context>

<pallas_src>
import math
import functools

import jax
import jax.numpy as jnp
from jax.experimental import pallas as pl
from jax.experimental.pallas import tpu as pltpu


def _attention_head_kernel(xp_ref, w_ref, b_ref, o_ref, *,
                           bb, seq_len, ksize, in_dim, out_dim, exp_dtype):
    """Fused QKV conv projection + scaled-dot-product attention for a Bb slab.

    xp_ref : (Bb, L + K - 1, C_in)   'same'-padded input slab (VMEM)
    w_ref  : (K*C_in, 3*C_out)       im2col-fused conv weights [q | k | v]
                                     (q columns pre-scaled by 1/sqrt(C_out))
    b_ref  : (1, 3*C_out)            fused conv biases (q pre-scaled)
    o_ref  : (Bb, 1, L*C_out)        lane-dense attention embedding
    """
    xp = xp_ref[...]                                                # (Bb, Lp, C_in)

    # --- im2col: one matmul for all K taps and all of q|k|v ------------------
    cols = jnp.concatenate([xp[:, k:k + seq_len, :] for k in range(ksize)],
                           axis=-1)                                 # (Bb, L, K*C_in)
    cols = cols.reshape(bb * seq_len, ksize * in_dim)               # M = Bb*L

    bias = jnp.broadcast_to(b_ref[...], (bb * seq_len, 3 * out_dim))
    qkv = bias + jnp.dot(cols, w_ref[...],
                         preferred_element_type=jnp.float32)        # (Bb*L, 3*C_out)
    qkv = qkv.reshape(bb, seq_len, 3 * out_dim)

    # bf16 MXU inputs, f32 accumulation (q already carries 1/sqrt(C_out)).
    q = qkv[:, :, :out_dim].astype(jnp.bfloat16)
    k = qkv[:, :, out_dim:2 * out_dim].astype(jnp.bfloat16)
    v = qkv[:, :, 2 * out_dim:].astype(jnp.bfloat16)

    # --- batched q @ k^T: contract last dims, batch over Bb (no k transpose) --
    s = jnp.einsum('bld,bmd->blm', q, k,
                   preferred_element_type=jnp.float32)              # (Bb, L, L)

    # --- softmax with deferred normalization ---------------------------------
    s = s - jnp.max(s, axis=-1, keepdims=True)
    p = jnp.exp(s.astype(exp_dtype))                     # bf16 EUP path (v6e/v7x)
    row_sum = jnp.sum(p.astype(jnp.float32), axis=-1, keepdims=True)   # (Bb, L, 1)

    o = jnp.einsum('blm,bmd->bld', p.astype(jnp.bfloat16), v,
                   preferred_element_type=jnp.float32)              # (Bb, L, C_out)
    # Normalize the (L, C_out) output instead of the (L, L) matrix; approx
    # reciprocal runs on the EUP slot, off the VALU.  (row_sum >= 1 here.)
    o = o * pl.reciprocal(row_sum, approx=True)

    # Lane-dense writeback: last dim L*C_out (= 128 here) -> unmasked full vst.
    o_ref[...] = o.reshape(bb, 1, seq_len * out_dim).astype(o_ref.dtype)


def _pick_batch_block(B, L, C_in, C_out, K):
    """Batch rows per grid step.

    Keep the per-step working set well inside a v7x-safe VMEM budget, prefer a
    grid length >= 2 so the 'parallel' axis can shard across v7x's two
    TensorCores, otherwise take the largest divisor of B (per-step overhead
    amortization is the only grid lever on v5e/v6e).
    """
    Lp = L + K - 1
    per_row = (Lp * C_in * 4                 # padded input block
               + L * 3 * C_out * 4           # fused qkv slab
               + L * L * (4 + 2 + 4)         # f32 scores + bf16 p + f32 copy
               + L * C_out * 4 * 2)          # output + normalized copy
    budget = 24 * 1024 * 1024                # ~half of the usable v7x VMEM
    cap = int(max(1, min(8, budget // max(per_row, 1))))
    divisors = [d for d in range(1, B + 1) if B % d == 0 and d <= cap]
    preferred = [d for d in divisors if B // d >= 2]   # keep both v7x TCs busy
    return max(preferred) if preferred else max(divisors)


def attention_head_forward(x, wq, bq, wk, bk, wv, bv):
    """x: (B, L, C_in) float32 (channels-last).  Returns (B, L, C_out)."""
    B, L, C_in = x.shape
    K, _, C_out = wq.shape

    # Fold the 1/sqrt(C_out) attention scale into the q projection (free glue),
    # fuse q|k|v and flatten to the im2col weight slab (K*C_in, 3*C_out).
    scale = 1.0 / math.sqrt(C_out)
    w_qkv = jnp.concatenate([wq * scale, wk, wv], axis=-1)       # (K, C_in, 3C)
    w_qkv = w_qkv.reshape(K * C_in, 3 * C_out)
    b_qkv = jnp.concatenate([bq * scale, bk, bv], axis=-1)       # (1, 3C)

    # 'same' conv halo realized once in the wrapper (cheap for these shapes).
    pad_lo = (K - 1) // 2
    pad_hi = K - 1 - pad_lo
    xp = jnp.pad(x, ((0, 0), (pad_lo, pad_hi), (0, 0)))
    Lp = L + K - 1

    Bb = _pick_batch_block(B, L, C_in, C_out, K)
    grid = (B // Bb,)

    cost = pl.CostEstimate(
        flops=2 * B * (L * (K * C_in) * 3 * C_out + 2 * L * L * C_out),
        transcendentals=B * L * L,
        bytes_accessed=4 * (xp.size + w_qkv.size + b_qkv.size + B * L * C_out),
    )

    def build_and_run(conservative):
        exp_dtype = jnp.float32 if conservative else jnp.bfloat16
        # Grid-invariant blocks: single-buffer them (saves VMEM + a DMA slot).
        const_kwargs = {} if conservative else {"pipeline_mode": pl.Buffered(1)}
        kern = functools.partial(_attention_head_kernel,
                                 bb=Bb, seq_len=L, ksize=K,
                                 in_dim=C_in, out_dim=C_out, exp_dtype=exp_dtype)
        call = pl.pallas_call(
            kern,
            out_shape=jax.ShapeDtypeStruct((B, 1, L * C_out), jnp.float32),
            grid_spec=pltpu.PrefetchScalarGridSpec(
                num_scalar_prefetch=0,
                grid=grid,
                in_specs=[
                    pl.BlockSpec((Bb, Lp, C_in), lambda i: (i, 0, 0)),
                    pl.BlockSpec((K * C_in, 3 * C_out), lambda i: (0, 0),
                                 **const_kwargs),
                    pl.BlockSpec((1, 3 * C_out), lambda i: (0, 0),
                                 **const_kwargs),
                ],
                out_specs=pl.BlockSpec((Bb, 1, L * C_out), lambda i: (i, 0, 0)),
            ),
            compiler_params=pltpu.CompilerParams(
                dimension_semantics=("parallel",),
                # Explicit limit: v7x has 64 MiB physical / 32 MiB scoped
                # default; 48 MiB is also safe on v5e/v6e (128 MiB physical).
                vmem_limit_bytes=48 * 1024 * 1024,
            ),
            cost_estimate=cost,
        )
        return jax.block_until_ready(call(xp, w_qkv, b_qkv))

    try:
        out = build_and_run(conservative=False)
    except Exception:
        # Portability fallback: some jax/Mosaic versions reject pipeline_mode
        # single-buffering or bf16 exp; re-run the same kernel conservatively.
        out = build_and_run(conservative=True)

    return out.reshape(B, L, C_out)


def _reference_forward(x, wq, bq, wk, bk, wv, bv):
    """Pure-JAX f32 reference mirroring the PyTorch forward (sanity check)."""
    K = wq.shape[0]
    pad_lo = (K - 1) // 2
    xp = jnp.pad(x, ((0, 0), (pad_lo, K - 1 - pad_lo), (0, 0)))
    L = x.shape[1]

    def conv(w, b):
        out = sum(jnp.einsum('blc,cd->bld', xp[:, k:k + L, :], w[k])
                  for k in range(K))
        return out + b[None]

    q = conv(wq, bq); k = conv(wk, bk); v = conv(wv, bv)
    s = jnp.einsum('bld,bmd->blm', q, k) / math.sqrt(q.shape[-1])
    p = jax.nn.softmax(s, axis=-1)
    return jnp.einsum('blm,bmd->bld', p, v)


if __name__ == "__main__":
    # Small shapes consistent with the module: Conv1d expects (B, C_in, L).
    B, C_in, C_out, L, K = 2, 4, 8, 16, 3

    key = jax.random.PRNGKey(0)
    kx, kwq, kwk, kwv, kbq, kbk, kbv = jax.random.split(key, 7)

    # deterministic param init (PyTorch-style uniform bound), synthetic weights
    bound = 1.0 / math.sqrt(C_in * K)
    def u(k, shape):
        return jax.random.uniform(k, shape, jnp.float32, -bound, bound)

    wq = u(kwq, (K, C_in, C_out)); bq = u(kbq, (1, C_out))
    wk = u(kwk, (K, C_in, C_out)); bk = u(kbk, (1, C_out))
    wv = u(kwv, (K, C_in, C_out)); bv = u(kbv, (1, C_out))

    x_ncw = jax.random.normal(kx, (B, C_in, L), jnp.float32)    # PyTorch layout
    x = jnp.transpose(x_ncw, (0, 2, 1))                          # -> (B, L, C_in)

    out = attention_head_forward(x, wq, bq, wk, bk, wv, bv)
    out = jax.block_until_ready(out)

    ref = _reference_forward(x, wq, bq[0], wk, bk[0], wv, bv[0])
    assert out.shape == (B, L, C_out)
    # bf16 MXU inputs / bf16 exp / approx reciprocal -> loosened tolerance
    assert jnp.allclose(out, ref, atol=3e-2, rtol=3e-2)

    print("KERNEL_OK")
</pallas_src>

<mosaic_0001>
module attributes {stable_mosaic.version = 11 : i64} {
  func.func @_attention_head_kernel(%arg0: i32, %arg1: memref<1x18x4xf32, #tpu.memory_space<vmem>>, %arg2: memref<12x24xf32, #tpu.memory_space<vmem>>, %arg3: memref<1x24xf32, #tpu.memory_space<vmem>>, %arg4: memref<1x1x128xf32, #tpu.memory_space<vmem>>) attributes {dimension_semantics = [#tpu.dimension_semantics<parallel>], iteration_bounds = array<i64: 2>, scalar_prefetch = 0 : i64, scratch_operands = 0 : i64, tpu.core_type = #tpu.core_type<tc>, window_params = [{transform_indices = @transform_0, window_bounds = array<i64: 1, 18, 4>}, {pipeline_mode = #tpu.pipeline_mode<synchronous>, transform_indices = @transform_1, window_bounds = array<i64: 12, 24>}, {pipeline_mode = #tpu.pipeline_mode<synchronous>, transform_indices = @transform_2, window_bounds = array<i64: 1, 24>}, {transform_indices = @transform_3, window_bounds = array<i64: 1, 1, 128>}]} {
    %c0 = arith.constant 0 : index
    %c0_0 = arith.constant 0 : index
    %c0_1 = arith.constant 0 : index
    %0 = vector.load %arg1[%c0, %c0_0, %c0_1] : memref<1x18x4xf32, #tpu.memory_space<vmem>>, vector<1x18x4xf32>
    %1 = vector.extract_strided_slice %0 {offsets = [0, 0, 0], sizes = [1, 16, 4], strides = [1, 1, 1]} : vector<1x18x4xf32> to vector<1x16x4xf32>
    %2 = vector.extract_strided_slice %0 {offsets = [0, 1, 0], sizes = [1, 16, 4], strides = [1, 1, 1]} : vector<1x18x4xf32> to vector<1x16x4xf32>
    %3 = vector.extract_strided_slice %0 {offsets = [0, 2, 0], sizes = [1, 16, 4], strides = [1, 1, 1]} : vector<1x18x4xf32> to vector<1x16x4xf32>
    %4 = tpu.concatenate %1, %2, %3 in 2 : vector<1x16x4xf32>, vector<1x16x4xf32>, vector<1x16x4xf32> -> vector<1x16x12xf32>
    %5 = vector.shape_cast %4 : vector<1x16x12xf32> to vector<16x12xf32>
    %c0_2 = arith.constant 0 : index
    %c0_3 = arith.constant 0 : index
    %6 = vector.load %arg3[%c0_2, %c0_3] : memref<1x24xf32, #tpu.memory_space<vmem>>, vector<1x24xf32>
    %7 = vector.shape_cast %6 : vector<1x24xf32> to vector<1x24xf32>
    %8 = vector.broadcast %7 : vector<1x24xf32> to vector<16x24xf32>
    %c0_4 = arith.constant 0 : index
    %c0_5 = arith.constant 0 : index
    %9 = vector.load %arg2[%c0_4, %c0_5] : memref<12x24xf32, #tpu.memory_space<vmem>>, vector<12x24xf32>
    %cst = arith.constant dense<0.000000e+00> : vector<16x24xf32>
    %10 = tpu.matmul %5, %9, %cst {dimension_numbers = #tpu.dot_dimension_numbers<[1], [0], [0], [1], [0, 0, 1, 1], [], []>} : vector<16x12xf32>, vector<12x24xf32>, vector<16x24xf32> -> vector<16x24xf32>
    %11 = arith.addf %8, %10 : vector<16x24xf32>
    %12 = vector.shape_cast %11 : vector<16x24xf32> to vector<1x16x24xf32>
    %13 = vector.extract_strided_slice %12 {offsets = [0, 0, 0], sizes = [1, 16, 8], strides = [1, 1, 1]} : vector<1x16x24xf32> to vector<1x16x8xf32>
    %14 = arith.truncf %13 : vector<1x16x8xf32> to vector<1x16x8xbf16>
    %15 = vector.extract_strided_slice %12 {offsets = [0, 0, 8], sizes = [1, 16, 8], strides = [1, 1, 1]} : vector<1x16x24xf32> to vector<1x16x8xf32>
    %16 = arith.truncf %15 : vector<1x16x8xf32> to vector<1x16x8xbf16>
    %17 = vector.extract_strided_slice %12 {offsets = [0, 0, 16], sizes = [1, 16, 8], strides = [1, 1, 1]} : vector<1x16x24xf32> to vector<1x16x8xf32>
    %18 = arith.truncf %17 : vector<1x16x8xf32> to vector<1x16x8xbf16>
    "tpu.trace_start"() <{level = 10 : i32, message = "bld,bmd->blm"}> : () -> ()
    %cst_6 = arith.constant dense<0.000000e+00> : vector<1x16x16xf32>
    %19 = tpu.matmul %14, %16, %cst_6 {dimension_numbers = #tpu.dot_dimension_numbers<[2], [2], [1], [1], [0, 0, 0, 1, 1, 1], [0], [0]>} : vector<1x16x8xbf16>, vector<1x16x8xbf16>, vector<1x16x16xf32> -> vector<1x16x16xf32>
    "tpu.trace_stop"() : () -> ()
    %cst_7 = arith.constant dense<0xFF800000> : vector<1x16xf32>
    %20 = vector.multi_reduction <maximumf>, %19, %cst_7 [2] : vector<1x16x16xf32> to vector<1x16xf32>
    %21 = vector.shape_cast %20 : vector<1x16xf32> to vector<1x16x1xf32>
    %22 = vector.broadcast %21 : vector<1x16x1xf32> to vector<1x16x16xf32>
    %23 = arith.subf %19, %22 : vector<1x16x16xf32>
    %24 = arith.truncf %23 : vector<1x16x16xf32> to vector<1x16x16xbf16>
    %25 = math.exp %24 : vector<1x16x16xbf16>
    %26 = arith.extf %25 : vector<1x16x16xbf16> to vector<1x16x16xf32>
    %cst_8 = arith.constant dense<0.000000e+00> : vector<1x16xf32>
    %27 = vector.multi_reduction <add>, %26, %cst_8 [2] : vector<1x16x16xf32> to vector<1x16xf32>
    %28 = vector.shape_cast %27 : vector<1x16xf32> to vector<1x16x1xf32>
    "tpu.trace_start"() <{level = 10 : i32, message = "blm,bmd->bld"}> : () -> ()
    %cst_9 = arith.constant dense<0.000000e+00> : vector<1x16x8xf32>
    %29 = tpu.matmul %25, %18, %cst_9 {dimension_numbers = #tpu.dot_dimension_numbers<[2], [1], [1], [2], [0, 0, 0, 1, 1, 2], [0], [0]>} : vector<1x16x16xbf16>, vector<1x16x8xbf16>, vector<1x16x8xf32> -> vector<1x16x8xf32>
    "tpu.trace_stop"() : () -> ()
    %30 = tpu.reciprocal %28 {approx = true} : vector<1x16x1xf32> -> vector<1x16x1xf32>
    %31 = vector.broadcast %30 : vector<1x16x1xf32> to vector<1x16x8xf32>
    %32 = arith.mulf %29, %31 : vector<1x16x8xf32>
    %33 = vector.shape_cast %32 : vector<1x16x8xf32> to vector<1x1x128xf32>
    %c0_10 = arith.constant 0 : index
    %c0_11 = arith.constant 0 : index
    %c0_12 = arith.constant 0 : index
    %34 = vector.load %arg4[%c0_10, %c0_11, %c0_12] : memref<1x1x128xf32, #tpu.memory_space<vmem>>, vector<1x1x128xf32>
    tpu.vector_store %arg4[%c0_10, %c0_11, %c0_12], %33 {strides = array<i32>} : memref<1x1x128xf32, #tpu.memory_space<vmem>>, vector<1x1x128xf32>,
    return
  }
  func.func @transform_0(%arg0: i32) -> (i32, i32, i32) {
    %c0_i32 = arith.constant 0 : i32
    %c0_i32_0 = arith.constant 0 : i32
    %c0_i32_1 = arith.constant 0 : i32
    return %arg0, %c0_i32, %c0_i32_0 : i32, i32, i32
  }
  func.func @transform_1(%arg0: i32) -> (i32, i32) {
    %c0_i32 = arith.constant 0 : i32
    %c0_i32_0 = arith.constant 0 : i32
    %c0_i32_1 = arith.constant 0 : i32
    return %c0_i32, %c0_i32_0 : i32, i32
  }
  func.func @transform_2(%arg0: i32) -> (i32, i32) {
    %c0_i32 = arith.constant 0 : i32
    %c0_i32_0 = arith.constant 0 : i32
    %c0_i32_1 = arith.constant 0 : i32
    return %c0_i32, %c0_i32_0 : i32, i32
  }
  func.func @transform_3(%arg0: i32) -> (i32, i32, i32) {
    %c0_i32 = arith.constant 0 : i32
    %c0_i32_0 = arith.constant 0 : i32
    %c0_i32_1 = arith.constant 0 : i32
    return %arg0, %c0_i32, %c0_i32_0 : i32, i32, i32
  }
}

module attributes {stable_mosaic.version = 11 : i64} {
  func.func @_attention_head_kernel(%arg0: i32, %arg1: memref<1x18x4xf32, #tpu.memory_space<vmem>>, %arg2: memref<12x24xf32, #tpu.memory_space<vmem>>, %arg3: memref<1x24xf32, #tpu.memory_space<vmem>>, %arg4: memref<1x1x128xf32, #tpu.memory_space<vmem>>) attributes {dimension_semantics = [#tpu.dimension_semantics<parallel>], iteration_bounds = array<i64: 2>, scalar_prefetch = 0 : i64, scratch_operands = 0 : i64, tpu.core_type = #tpu.core_type<tc>, window_params = [{transform_indices = @transform_0, window_bounds = array<i64: 1, 18, 4>}, {pipeline_mode = #tpu.pipeline_mode<synchronous>, transform_indices = @transform_1, window_bounds = array<i64: 12, 24>}, {pipeline_mode = #tpu.pipeline_mode<synchronous>, transform_indices = @transform_2, window_bounds = array<i64: 1, 24>}, {transform_indices = @transform_3, window_bounds = array<i64: 1, 1, 128>}]} {
    %c0 = arith.constant 0 : index
    %c0_0 = arith.constant 0 : index
    %c0_1 = arith.constant 0 : index
    %0 = vector.load %arg1[%c0, %c0_0, %c0_1] : memref<1x18x4xf32, #tpu.memory_space<vmem>>, vector<1x18x4xf32>
    %1 = vector.extract_strided_slice %0 {offsets = [0, 0, 0], sizes = [1, 16, 4], strides = [1, 1, 1]} : vector<1x18x4xf32> to vector<1x16x4xf32>
    %2 = vector.extract_strided_slice %0 {offsets = [0, 1, 0], sizes = [1, 16, 4], strides = [1, 1, 1]} : vector<1x18x4xf32> to vector<1x16x4xf32>
    %3 = vector.extract_strided_slice %0 {offsets = [0, 2, 0], sizes = [1, 16, 4], strides = [1, 1, 1]} : vector<1x18x4xf32> to vector<1x16x4xf32>
    %4 = tpu.concatenate %1, %2, %3 in 2 : vector<1x16x4xf32>, vector<1x16x4xf32>, vector<1x16x4xf32> -> vector<1x16x12xf32>
    %5 = vector.shape_cast %4 : vector<1x16x12xf32> to vector<16x12xf32>
    %c0_2 = arith.constant 0 : index
    %c0_3 = arith.constant 0 : index
    %6 = vector.load %arg3[%c0_2, %c0_3] : memref<1x24xf32, #tpu.memory_space<vmem>>, vector<1x24xf32>
    %7 = vector.shape_cast %6 : vector<1x24xf32> to vector<1x24xf32>
    %8 = vector.broadcast %7 : vector<1x24xf32> to vector<16x24xf32>
    %c0_4 = arith.constant 0 : index
    %c0_5 = arith.constant 0 : index
    %9 = vector.load %arg2[%c0_4, %c0_5] : memref<12x24xf32, #tpu.memory_space<vmem>>, vector<12x24xf32>
    %cst = arith.constant dense<0.000000e+00> : vector<16x24xf32>
    %10 = tpu.matmul %5, %9, %cst {dimension_numbers = #tpu.dot_dimension_numbers<[1], [0], [0], [1], [0, 0, 1, 1], [], []>} : vector<16x12xf32>, vector<12x24xf32>, vector<16x24xf32> -> vector<16x24xf32>
    %11 = arith.addf %8, %10 : vector<16x24xf32>
    %12 = vector.shape_cast %11 : vector<16x24xf32> to vector<1x16x24xf32>
    %13 = vector.extract_strided_slice %12 {offsets = [0, 0, 0], sizes = [1, 16, 8], strides = [1, 1, 1]} : vector<1x16x24xf32> to vector<1x16x8xf32>
    %14 = arith.truncf %13 : vector<1x16x8xf32> to vector<1x16x8xbf16>
    %15 = vector.extract_strided_slice %12 {offsets = [0, 0, 8], sizes = [1, 16, 8], strides = [1, 1, 1]} : vector<1x16x24xf32> to vector<1x16x8xf32>
    %16 = arith.truncf %15 : vector<1x16x8xf32> to vector<1x16x8xbf16>
    %17 = vector.extract_strided_slice %12 {offsets = [0, 0, 16], sizes = [1, 16, 8], strides = [1, 1, 1]} : vector<1x16x24xf32> to vector<1x16x8xf32>
    %18 = arith.truncf %17 : vector<1x16x8xf32> to vector<1x16x8xbf16>
    "tpu.trace_start"() <{level = 10 : i32, message = "bld,bmd->blm"}> : () -> ()
    %cst_6 = arith.constant dense<0.000000e+00> : vector<1x16x16xf32>
    %19 = tpu.matmul %14, %16, %cst_6 {dimension_numbers = #tpu.dot_dimension_numbers<[2], [2], [1], [1], [0, 0, 0, 1, 1, 1], [0], [0]>} : vector<1x16x8xbf16>, vector<1x16x8xbf16>, vector<1x16x16xf32> -> vector<1x16x16xf32>
    "tpu.trace_stop"() : () -> ()
    %cst_7 = arith.constant dense<0xFF800000> : vector<1x16xf32>
    %20 = vector.multi_reduction <maximumf>, %19, %cst_7 [2] : vector<1x16x16xf32> to vector<1x16xf32>
    %21 = vector.shape_cast %20 : vector<1x16xf32> to vector<1x16x1xf32>
    %22 = vector.broadcast %21 : vector<1x16x1xf32> to vector<1x16x16xf32>
    %23 = arith.subf %19, %22 : vector<1x16x16xf32>
    %24 = math.exp %23 : vector<1x16x16xf32>
    %cst_8 = arith.constant dense<0.000000e+00> : vector<1x16xf32>
    %25 = vector.multi_reduction <add>, %24, %cst_8 [2] : vector<1x16x16xf32> to vector<1x16xf32>
    %26 = vector.shape_cast %25 : vector<1x16xf32> to vector<1x16x1xf32>
    %27 = arith.truncf %24 : vector<1x16x16xf32> to vector<1x16x16xbf16>
    "tpu.trace_start"() <{level = 10 : i32, message = "blm,bmd->bld"}> : () -> ()
    %cst_9 = arith.constant dense<0.000000e+00> : vector<1x16x8xf32>
    %28 = tpu.matmul %27, %18, %cst_9 {dimension_numbers = #tpu.dot_dimension_numbers<[2], [1], [1], [2], [0, 0, 0, 1, 1, 2], [0], [0]>} : vector<1x16x16xbf16>, vector<1x16x8xbf16>, vector<1x16x8xf32> -> vector<1x16x8xf32>
    "tpu.trace_stop"() : () -> ()
    %29 = tpu.reciprocal %26 {approx = true} : vector<1x16x1xf32> -> vector<1x16x1xf32>
    %30 = vector.broadcast %29 : vector<1x16x1xf32> to vector<1x16x8xf32>
    %31 = arith.mulf %28, %30 : vector<1x16x8xf32>
    %32 = vector.shape_cast %31 : vector<1x16x8xf32> to vector<1x1x128xf32>
    %c0_10 = arith.constant 0 : index
    %c0_11 = arith.constant 0 : index
    %c0_12 = arith.constant 0 : index
    %33 = vector.load %arg4[%c0_10, %c0_11, %c0_12] : memref<1x1x128xf32, #tpu.memory_space<vmem>>, vector<1x1x128xf32>
    tpu.vector_store %arg4[%c0_10, %c0_11, %c0_12], %32 {strides = array<i32>} : memref<1x1x128xf32, #tpu.memory_space<vmem>>, vector<1x1x128xf32>,
    return
  }
  func.func @transform_0(%arg0: i32) -> (i32, i32, i32) {
    %c0_i32 = arith.constant 0 : i32
    %c0_i32_0 = arith.constant 0 : i32
    %c0_i32_1 = arith.constant 0 : i32
    return %arg0, %c0_i32, %c0_i32_0 : i32, i32, i32
  }
  func.func @transform_1(%arg0: i32) -> (i32, i32) {
    %c0_i32 = arith.constant 0 : i32
    %c0_i32_0 = arith.constant 0 : i32
    %c0_i32_1 = arith.constant 0 : i32
    return %c0_i32, %c0_i32_0 : i32, i32
  }
  func.func @transform_2(%arg0: i32) -> (i32, i32) {
    %c0_i32 = arith.constant 0 : i32
    %c0_i32_0 = arith.constant 0 : i32
    %c0_i32_1 = arith.constant 0 : i32
    return %c0_i32, %c0_i32_0 : i32, i32
  }
  func.func @transform_3(%arg0: i32) -> (i32, i32, i32) {
    %c0_i32 = arith.constant 0 : i32
    %c0_i32_0 = arith.constant 0 : i32
    %c0_i32_1 = arith.constant 0 : i32
    return %arg0, %c0_i32, %c0_i32_0 : i32, i32, i32
  }
}

</mosaic_0001>

<llo_original>
// kernel: tpu_custom_call.1
$region0: #{tpu_custom_call.1}
  #allocation0 [shape = 'u32[]', space=smem, size = 0x4, offset = 0x4, fixed_abs, tag = 'smem constant byte address 0x4 - core index']
  #allocation1 [shape = 'u32[144,128]{1,0:T(1,128)}', space=vmem, size = 0x12000, scoped, tag = 'internal scratch']
  %s0 = inlined_call_operand.vmem [shape: f32[2,18,4], index: 0, kind: input, shape index: {}]
  %s1 = inlined_call_operand.vmem [shape: f32[12,24], index: 1, kind: input, shape index: {}]
  %s2 = inlined_call_operand.vmem [shape: f32[1,24], index: 2, kind: input, shape index: {}]
  %s3 = inlined_call_operand.hbm [shape: f32[2,1,128], index: 3, kind: output, shape index: {}]
  %s4 = sld [smem:[#allocation0]]
  $region45: #{tpu_custom_call.1} parent=0
    _
  %s6 = ssub.s32 1, %s4
  %s7 = scalar_select 0, %s6, %s4
  $region1: #{tpu_custom_call.1} parent=0
    #allocation2 [shape = 'u8[1024]{0}', space=vmem, size = 0x400, scoped, tag = 'output window, operand 0']
    #allocation3 [shape = 's32[2]{0}', space=sflag, size = 0x8, scoped, tag = 'scoped memory for tpu_custom_call.1']
    %8 = vsyncpa [#allocation3], 0
    %s9 = scalar_lea.sflag [#allocation3], 1
    %10 = vsyncpa %s9, 0
    loop: start=0, step=1, limit=4
    $region2: #{tpu_custom_call.1} parent=1 // loop_pre_header
      _
    $region3: #{tpu_custom_call.1} parent=1 // loop_header
      %s12 = sphi 0, %s16
      %p13 = scmp.ge.s32.totalorder %s12, 4
      %s22 = sphi 0, %s24
      %s25 = sphi 0, %s22
      %s26 = sphi 0, %s25
      %s42 = sphi 0, %s26
      %s46 = sphi 0, %s46
      %s48 = sphi 0, %s46
      %s49 = sphi 0, %s48
      %s63 = sphi 0, %s49
      %s67 = sphi 0, %s67
      %s69 = sphi 0, %s67
      %s70 = sphi 0, %s69
      %s84 = sphi 0, %s70
      %s90 = sphi 0, %s92
      %s93 = sphi 0, %s90
      %s94 = sphi 0, %s93
      %s110 = sphi 0, %s94
    $region4: #{tpu_custom_call.1} parent=1 // loop_header_branch
      %15 = sbr.rel (%p13) target = $region8
    $region5: #{tpu_custom_call.1} parent=1 // loop_body
      %s17 = ssub.s32 %s12, 1
      %s18 = ssub.s32 %s12, 2
      %s19 = sadd.s32 %s12, 1
      %s20 = ssub.s32 %s12, %s19
      %p21 = scmp.eq.s32.totalorder %s20, 0
      %s23 = sadd.s32 %s22, 1
      %s24 = scalar_select %p21, %s22, %s23
      %p27 = pneg %p21
      %p28 = scmp.eq.s32.totalorder %s12, 1
      %p29 = por %p27, %p28
      %p30 = scmp.ne.s32.totalorder %s22, %s25
      %p31 = scmp.eq.s32.totalorder %s12, 0
      %p32 = por %p30, %p31
      %p33 = scmp.ne.s32.totalorder %s22, %s25
      %p34 = scmp.eq.s32.totalorder %s17, 1
      %p35 = por %p33, %p34
      %p36 = scmp.ne.s32.totalorder %s25, %s26
      %p37 = scmp.eq.s32.totalorder %s17, 0
      %p38 = por %p36, %p37
      %p39 = scmp.ne.s32.totalorder %s25, %s26
      %p40 = scmp.eq.s32.totalorder %s18, 1
      %p41 = por %p39, %p40
      %p43 = scmp.ne.s32.totalorder %s26, %s42
      %p44 = scmp.eq.s32.totalorder %s18, 0
      %p45 = por %p43, %p44
      %s47 = sadd.s32 %s46, 1
      %p50 = scmp.eq.s32.totalorder %s12, 1
      %p51 = scmp.ne.s32.totalorder %s46, %s48
      %p52 = scmp.eq.s32.totalorder %s12, 0
      %p53 = por %p51, %p52
      %p54 = scmp.ne.s32.totalorder %s46, %s48
      %p55 = scmp.eq.s32.totalorder %s17, 1
      %p56 = por %p54, %p55
      %p57 = scmp.ne.s32.totalorder %s48, %s49
      %p58 = scmp.eq.s32.totalorder %s17, 0
      %p59 = por %p57, %p58
      %p60 = scmp.ne.s32.totalorder %s48, %s49
      %p61 = scmp.eq.s32.totalorder %s18, 1
      %p62 = por %p60, %p61
      %p64 = scmp.ne.s32.totalorder %s49, %s63
      %p65 = scmp.eq.s32.totalorder %s18, 0
      %p66 = por %p64, %p65
      %s68 = sadd.s32 %s67, 1
      %p71 = scmp.eq.s32.totalorder %s12, 1
      %p72 = scmp.ne.s32.totalorder %s67, %s69
      %p73 = scmp.eq.s32.totalorder %s12, 0
      %p74 = por %p72, %p73
      %p75 = scmp.ne.s32.totalorder %s67, %s69
      %p76 = scmp.eq.s32.totalorder %s17, 1
      %p77 = por %p75, %p76
      %p78 = scmp.ne.s32.totalorder %s69, %s70
      %p79 = scmp.eq.s32.totalorder %s17, 0
      %p80 = por %p78, %p79
      %p81 = scmp.ne.s32.totalorder %s69, %s70
      %p82 = scmp.eq.s32.totalorder %s18, 1
      %p83 = por %p81, %p82
      %p85 = scmp.ne.s32.totalorder %s70, %s84
      %p86 = scmp.eq.s32.totalorder %s18, 0
      %p87 = por %p85, %p86
      %s88 = ssub.s32 %s12, %s19
      %p89 = scmp.eq.s32.totalorder %s88, 0
      %s91 = sadd.s32 %s90, 1
      %s92 = scalar_select %p89, %s90, %s91
      %p95 = pneg %p89
      %p96 = scmp.eq.s32.totalorder %s12, 1
      %p97 = por %p95, %p96
      %p98 = scmp.ne.s32.totalorder %s90, %s93
      %p99 = scmp.eq.s32.totalorder %s12, 0
      %p100 = por %p98, %p99
      %p101 = scmp.ne.s32.totalorder %s90, %s93
      %p102 = scmp.eq.s32.totalorder %s17, 1
      %p103 = por %p101, %p102
      %p104 = scmp.ne.s32.totalorder %s93, %s94
      %p105 = scmp.eq.s32.totalorder %s17, 0
      %p106 = por %p104, %p105
      %p107 = scmp.ne.s32.totalorder %s93, %s94
      %p108 = scmp.eq.s32.totalorder %s18, 1
      %p109 = por %p107, %p108
      %p111 = scmp.ne.s32.totalorder %s94, %s110
      %p112 = scmp.eq.s32.totalorder %s18, 0
      %p113 = por %p111, %p112
      %p114 = scmp.le.s32.totalorder 1, %s12
      %p115 = scmp.lt.s32.totalorder %s12, 3
      %p116 = pnand %p114, %p115
      %p117 = pneg %p116
      // Predicated region
      $region9: #{tpu_custom_call.1} parent=5 // pred_check
        _
      $region10: #{tpu_custom_call.1} parent=5 // pred_check_branch
        %119 = sbr.rel (%p116) target = $region12
      $region11: #{tpu_custom_call.1} parent=5 // pred_region
        %s120 = ssub.s32 %s12, 1
        // Predicated region
        $region13: #{tpu_custom_call.1} parent=11 // pred_check
          %p121 = pneg %p59
        $region14: #{tpu_custom_call.1} parent=11 // pred_check_branch
          %123 = sbr.rel (%p121) target = $region16
        $region15: #{tpu_custom_call.1} parent=11 // pred_region
          _
        $region16: #{tpu_custom_call.1} parent=11 // pred_fallthru
          _
        // Predicated region
        $region17: #{tpu_custom_call.1} parent=11 // pred_check
          %p124 = pneg %p80
        $region18: #{tpu_custom_call.1} parent=11 // pred_check_branch
          %126 = sbr.rel (%p124) target = $region20
        $region19: #{tpu_custom_call.1} parent=11 // pred_region
          _
        $region20: #{tpu_custom_call.1} parent=11 // pred_fallthru
          _
      $region12: #{tpu_custom_call.1} parent=5 // pred_fallthru
        _
      %p127 = scmp.lt.s32.totalorder %s12, 2
      // Predicated region
      $region21: #{tpu_custom_call.1} parent=5 // pred_check
        %p128 = pneg %p127
      $region22: #{tpu_custom_call.1} parent=5 // pred_check_branch
        %130 = sbr.rel (%p128) target = $region24
      $region23: #{tpu_custom_call.1} parent=5 // pred_region
        // Predicated region
        $region25: #{tpu_custom_call.1} parent=23 // pred_check
          %p131 = pneg %p32
        $region26: #{tpu_custom_call.1} parent=23 // pred_check_branch
          %133 = sbr.rel (%p131) target = $region28
        $region27: #{tpu_custom_call.1} parent=23 // pred_region
          %p134 = scmp.lt.s32.totalorder %s12, 1
          %s135 = scalar_select %p134, %s12, 1
          %s136 = smul.addr %s135, 3
          %s137 = smul.addr %s136, 8
          %s138 = scalar_lea.vmem %s0, %s137
        $region28: #{tpu_custom_call.1} parent=23 // pred_fallthru
          _
      $region24: #{tpu_custom_call.1} parent=5 // pred_fallthru
        _
      %p139 = scmp.le.s32.totalorder 1, %s12
      %p140 = scmp.lt.s32.totalorder %s12, 3
      %p141 = pnand %p139, %p140
      %p142 = pneg %p141
      // Predicated region
      $region29: #{tpu_custom_call.1} parent=5 // pred_check
        _
      $region30: #{tpu_custom_call.1} parent=5 // pred_check_branch
        %144 = sbr.rel (%p141) target = $region32
      $region31: #{tpu_custom_call.1} parent=5 // pred_region
        %s145 = ssub.s32 %s12, 1
        %p146 = scmp.lt.s32.totalorder %s17, 1
        %s147 = scalar_select %p146, %s17, 1
        %s148 = smul.addr %s147, 3
        %s149 = smul.addr %s148, 8
        %s150 = scalar_lea.vmem %s0, %s149
        %p151 = pneg %p38
        %p152 = pneg %p35
        %p153 = pneg %p59
        %p154 = pneg %p56
        %p155 = pneg %p80
        %p156 = pneg %p77
        %p157 = pneg %p106
        %p158 = pneg %p103
        %s159 = sand.u32 %s93, 1
        %s160 = scalar_lea.sflag [#allocation3], %s159
        %s161 = sand.u32 %s93, 1
        %s162 = scalar_lea.vmem [#allocation2], %s161
        %p163 = scmp.lt.s32.totalorder %s17, 1
        %s164 = scalar_select %p163, %s17, 1
        %s165 = smul.addr %s164, 3
        %s166 = smul.addr %s165, 8
        %s167 = scalar_lea.vmem %s0, %s166
        %v169 = vld [vmem:[%s167] sm:$0xff]
        %v170 = vld [vmem:[%s167 + $0x8] sm:$0xff]
        %v171 = vld [vmem:[%s167 + $0x10] sm:$0x3]
        %vm175 = vcmask 1046528
        %v176 = vrot.slane %v169, 1
        %v177 = vrot.slane %v170, 1
        %v178 = vsel %vm175, %v176, %v177
        %v179 = vrot.slane %v171, 1
        %v180 = vsel %vm175, %v177, %v179
        %181 = vrot.lane.b32.xlu0 %v178, 4
        %v182 = vpop.permute.xlu0 %181
        %183 = vrot.lane.b32.xlu0 %v180, 4
        %v184 = vpop.permute.xlu0 %183
        %vm187 = vcmask 1045504
        %v188 = vrot.slane %v169, 2
        %v189 = vrot.slane %v170, 2
        %v190 = vsel %vm187, %v188, %v189
        %v191 = vrot.slane %v171, 2
        %v192 = vsel %vm187, %v189, %v191
        %193 = vrot.lane.b32.xlu0 %v190, 8
        %v194 = vpop.permute.xlu0 %193
        %195 = vrot.lane.b32.xlu0 %v192, 8
        %v196 = vpop.permute.xlu0 %195
        %vm199 = vcmask 31744
        %v200 = vsel %vm199, %v169, %v182
        %v201 = vsel %vm199, %v170, %v184
        %vm202 = vcmask 64512
        %v203 = vsel %vm202, %v200, %v194
        %v204 = vsel %vm202, %v201, %v196
        %v205 = vld [vmem:[%s2] sm:$0x1]
        %v207 = vlaneseq
        %v208 = vshrl.u32 %v207, 7
        %v209 = vsub.s32 0, %v208
        %v210 = vrot.slane %v205, %v209
        %v212 = vld [vmem:[%s1] sm:$0xff]
        %v213 = vld [vmem:[%s1 + $0x8] sm:$0xf]
        %vm214 = vcmask 97280
        %v216 = vsel %vm214, %v203, 0
        %v219 = vsel %vm214, %v204, 0
        %vm221 = vcmask 1043456
        %v223 = vsel %vm221, %v213, 0
        %225 = vmatprep.subr.mxu0 0.0
        %226 = vmatpush1.msra.mxu0 %v212
        %227 = vmatprep.subr.mxu0 0.0
        %228 = vmatpush1.msra.mxu0 %v223
        %229 = vmatprep.subr.mxu0 0.0
        %230 = vmatpush1.msra.mxu0 0.0
        %231 = vmatprep.subr.mxu0 0.0
        %232 = vmatpush1.msra.mxu0 0.0
        %233 = vmatprep.subr.mxu0 0.0
        %234 = vmatpush1.msra.mxu0 0.0
        %235 = vmatprep.subr.mxu0 0.0
        %236 = vmatpush1.msra.mxu0 0.0
        %237 = vmatprep.subr.mxu0 0.0
        %238 = vmatpush1.msra.mxu0 0.0
        %239 = vmatprep.subr.mxu0 0.0
        %240 = vmatpush1.msra.mxu0 0.0
        %241 = vmatprep.subr.mxu0 0.0
        %242 = vmatpush1.msra.mxu0 0.0
        %243 = vmatprep.subr.mxu0 0.0
        %244 = vmatpush1.msra.mxu0 0.0
        %245 = vmatprep.subr.mxu0 0.0
        %246 = vmatpush1.msra.mxu0 0.0
        %247 = vmatprep.subr.mxu0 0.0
        %248 = vmatpush1.msra.mxu0 0.0
        %249 = vmatprep.subr.mxu0 0.0
        %250 = vmatpush1.msra.mxu0 0.0
        %251 = vmatprep.subr.mxu0 0.0
        %252 = vmatpush1.msra.mxu0 0.0
        %253 = vmatprep.subr.mxu0 0.0
        %254 = vmatpush1.msra.mxu0 0.0
        %255 = vmatprep.subr.mxu0 0.0
        %256 = vmatpush1.msra.mxu0 0.0
        %257 = vmatprep.subr.mxu0 0.0
        %258 = vmatpush1.msra.mxu0 0.0
        %259 = vmatprep.subr.mxu0 0.0
        %260 = vmatpush1.msra.mxu0 0.0
        %261 = vmatprep.subr.mxu0 0.0
        %262 = vmatpush1.msra.mxu0 0.0
        %263 = vmatprep.subr.mxu0 0.0
        %264 = vmatpush1.msra.mxu0 0.0
        %265 = vmatprep.subr.mxu0 0.0
        %266 = vmatpush1.msra.mxu0 0.0
        %267 = vmatprep.subr.mxu0 0.0
        %268 = vmatpush1.msra.mxu0 0.0
        %269 = vmatprep.subr.mxu0 0.0
        %270 = vmatpush1.msra.mxu0 0.0
        %271 = vmatprep.subr.mxu0 0.0
        %272 = vmatpush1.msra.mxu0 0.0
        %273 = vmatprep.subr.mxu0 0.0
        %274 = vmatpush1.msra.mxu0 0.0
        %275 = vmatprep.subr.mxu0 0.0
        %276 = vmatpush1.msra.mxu0 0.0
        %277 = vmatprep.subr.mxu0 0.0
        %278 = vmatpush1.msra.mxu0 0.0
        %279 = vmatprep.subr.mxu0 0.0
        %280 = vmatpush1.msra.mxu0 0.0
        %281 = vmatprep.subr.mxu0 0.0
        %282 = vmatpush1.msra.mxu0 0.0
        %283 = vmatprep.subr.mxu0 0.0
        %284 = vmatpush1.msra.mxu0 0.0
        %285 = vmatprep.subr.mxu0 0.0
        %286 = vmatpush1.msra.mxu0 0.0
        %287 = vmatprep.subr.mxu0 0.0
        %288 = vmatpush1.msra.mxu0 0.0
        %289 = vmatprep.mubr.f32.mxu0 0.0
        %290 = vmatmul.mubr.f32.gmra.mrb[0].mxu0 %v216
        %v291 = vpop.f32.mrb[0].mxu0
        %v292 = vadd.f32 0.0, %v291
        %v293 = vpop.f32.mrb[0].mxu0
        %294 = vmatprep.mubr.f32.mxu0 0.0
        %295 = vmatmul.mubr.f32.gmra.mrb[0].mxu0 %v219
        %v296 = vpop.f32.mrb[0].mxu0
        %v297 = vadd.f32 0.0, %v296
        %v298 = vpop.f32.mrb[0].mxu0
        %299 = vdwg.mxu0
        %v300 = vadd.f32 %v210, %v292
        %v301 = vadd.f32 %v210, %v297
        %v302 = vpack.c.bf16 %v301, %v300
        %304 = vrot.lane.b32.xlu0 %v302, 120
        %v305 = vpop.permute.xlu0 %304
        %v307 = vsel %vm202, %v302, 0
        %v310 = vsel %vm202, %v305, 0
        %312 = vmatprep.subr.bf16.mxu0 0
        %313 = vmatpush1.bf16.xpose.msra.mxu0 %v310
        %314 = vmatprep.subr.bf16.mxu0 0
        %315 = vmatpush1.bf16.xpose.msra.mxu0 0
        %316 = vmatprep.subr.bf16.mxu0 0
        %317 = vmatpush1.bf16.xpose.msra.mxu0 0
        %318 = vmatprep.subr.bf16.mxu0 0
        %319 = vmatpush1.bf16.xpose.msra.mxu0 0
        %320 = vmatprep.subr.bf16.mxu0 0
        %321 = vmatpush1.bf16.xpose.msra.mxu0 0
        %322 = vmatprep.subr.bf16.mxu0 0
        %323 = vmatpush1.bf16.xpose.msra.mxu0 0
        %324 = vmatprep.subr.bf16.mxu0 0
        %325 = vmatpush1.bf16.xpose.msra.mxu0 0
        %326 = vmatprep.subr.bf16.mxu0 0
        %327 = vmatpush1.bf16.xpose.msra.mxu0 0
        %328 = vmatprep.subr.bf16.mxu0 0
        %329 = vmatpush1.bf16.xpose.msra.mxu0 0
        %330 = vmatprep.subr.bf16.mxu0 0
        %331 = vmatpush1.bf16.xpose.msra.mxu0 0
        %332 = vmatprep.subr.bf16.mxu0 0
        %333 = vmatpush1.bf16.xpose.msra.mxu0 0
        %334 = vmatprep.subr.bf16.mxu0 0
        %335 = vmatpush1.bf16.xpose.msra.mxu0 0
        %336 = vmatprep.subr.bf16.mxu0 0
        %337 = vmatpush1.bf16.xpose.msra.mxu0 0
        %338 = vmatprep.subr.bf16.mxu0 0
        %339 = vmatpush1.bf16.xpose.msra.mxu0 0
        %340 = vmatprep.subr.bf16.mxu0 0
        %341 = vmatpush1.bf16.xpose.msra.mxu0 0
        %342 = vmatprep.subr.bf16.mxu0 0
        %343 = vmatpush1.bf16.xpose.msra.mxu0 0
        %344 = vmatprep.mubr.bf16.mxu0 0
        %345 = vmatmul.mubr.bf16.gmra.mrb[0].mxu0 %v307
        %v346 = vpop.f32.mrb[0].mxu0
        %v347 = vadd.f32 0.0, %v346
        %v348 = vpop.f32.mrb[0].mxu0
        %v349 = vpop.f32.mrb[0].mxu0
        %v350 = vadd.f32 0.0, %v349
        %v351 = vpop.f32.mrb[0].mxu0
        %352 = vdwg.mxu0
        %vm353 = vcmask 130048
        %v354 = vsel %vm353, %v347, -inf
        %355 = vmax.xlane.f32.xlu0 %v354
        %v356 = vpop.xlane.xlu0 %355
        %v357 = vsel %vm353, %v350, -inf
        %358 = vmax.xlane.f32.xlu0 %v357
        %v359 = vpop.xlane.xlu0 %358
        %v360 = vsub.f32 %v347, %v356
        %v361 = vsub.f32 %v350, %v359
        %v362 = vpack.c.bf16 %v361, %v360
        %v364 = vmul.bf16 %v362, 1069105081
        %v365 = vpow.bf16.pop %v364
        %v366 = vunpack.c.l.bf16 %v365
        %v367 = vunpack.c.h.bf16 %v365
        %v368 = vsel %vm353, %v366, 0.0
        %369 = vadd.xlane.f32.xlu0 %v368
        %v370 = vpop.xlane.xlu0 %369
        %v371 = vsel %vm353, %v367, 0.0
        %372 = vadd.xlane.f32.xlu0 %v371
        %v373 = vpop.xlane.xlu0 %372
        %374 = vrot.lane.b32.xlu0 %v302, 112
        %v375 = vpop.permute.xlu0 %374
        %v378 = vsel %vm353, %v365, 0
        %380 = vmatprep.subr.bf16.mxu0 0
        %381 = vmatpush1.bf16.msra.mxu0 %v375
        %382 = vmatprep.subr.bf16.mxu0 0
        %383 = vmatpush1.bf16.msra.mxu0 0
        %384 = vmatprep.subr.bf16.mxu0 0
        %385 = vmatpush1.bf16.msra.mxu0 0
        %386 = vmatprep.subr.bf16.mxu0 0
        %387 = vmatpush1.bf16.msra.mxu0 0
        %388 = vmatprep.subr.bf16.mxu0 0
        %389 = vmatpush1.bf16.msra.mxu0 0
        %390 = vmatprep.subr.bf16.mxu0 0
        %391 = vmatpush1.bf16.msra.mxu0 0
        %392 = vmatprep.subr.bf16.mxu0 0
        %393 = vmatpush1.bf16.msra.mxu0 0
        %394 = vmatprep.subr.bf16.mxu0 0
        %395 = vmatpush1.bf16.msra.mxu0 0
        %396 = vmatprep.subr.bf16.mxu0 0
        %397 = vmatpush1.bf16.msra.mxu0 0
        %398 = vmatprep.subr.bf16.mxu0 0
        %399 = vmatpush1.bf16.msra.mxu0 0
        %400 = vmatprep.subr.bf16.mxu0 0
        %401 = vmatpush1.bf16.msra.mxu0 0
        %402 = vmatprep.subr.bf16.mxu0 0
        %403 = vmatpush1.bf16.msra.mxu0 0
        %404 = vmatprep.subr.bf16.mxu0 0
        %405 = vmatpush1.bf16.msra.mxu0 0
        %406 = vmatprep.subr.bf16.mxu0 0
        %407 = vmatpush1.bf16.msra.mxu0 0
        %408 = vmatprep.subr.bf16.mxu0 0
        %409 = vmatpush1.bf16.msra.mxu0 0
        %410 = vmatprep.subr.bf16.mxu0 0
        %411 = vmatpush1.bf16.msra.mxu0 0
        %412 = vmatprep.mubr.bf16.mxu0 0
        %413 = vmatmul.mubr.bf16.gmra.mrb[0].mxu0 %v378
        %v414 = vpop.f32.mrb[0].mxu0
        %v415 = vadd.f32 0.0, %v414
        %v416 = vpop.f32.mrb[0].mxu0
        %v417 = vpop.f32.mrb[0].mxu0
        %v418 = vadd.f32 0.0, %v417
        %v419 = vpop.f32.mrb[0].mxu0
        %420 = vdwg.mxu0
        %v421 = vrcp.pop %v370
        %v422 = vrcp.pop %v373
        %v423 = vmul.f32 %v415, %v421
        %v424 = vmul.f32 %v418, %v422
        %v425 = vcombine.high %v423, 0.0
        %v427 = vunpack.c.l.s4 1983009808
        %v428 = vunpack.c.0.s8 %v427
        %v429 = vlaneseq
        %v430 = vshrl.u32 %v429, 7
        %v431 = vsub.s32 %v428, %v430
        %v432 = vrot.slane %v423, %v431
        %v434 = vunpack.c.l.s4 1983009808
        %v435 = vunpack.c.0.s8 %v434
        %v436 = vlaneseq
        %v437 = vshrl.u32 %v436, 7
        %v438 = vsub.s32 %v435, %v437
        %v439 = vrot.slane %v425, %v438
        %v440 = vcombine.high %v432, 0.0
        %v442 = vunpack.c.l.s4 1934713408
        %v443 = vunpack.c.0.s8 %v442
        %v444 = vlaneseq
        %v445 = vshrl.u32 %v444, 7
        %v446 = vsub.s32 %v443, %v445
        %v447 = vrot.slane %v432, %v446
        %v449 = vunpack.c.l.s4 1934713408
        %v450 = vunpack.c.0.s8 %v449
        %v451 = vlaneseq
        %v452 = vshrl.u32 %v451, 7
        %v453 = vsub.s32 %v450, %v452
        %v454 = vrot.slane %v440, %v453
        %v455 = vcombine.high %v439, 0.0
        %v457 = vunpack.c.l.s4 1934713408
        %v458 = vunpack.c.0.s8 %v457
        %v459 = vlaneseq
        %v460 = vshrl.u32 %v459, 7
        %v461 = vsub.s32 %v458, %v460
        %v462 = vrot.slane %v439, %v461
        %v464 = vunpack.c.l.s4 1934713408
        %v465 = vunpack.c.0.s8 %v464
        %v466 = vlaneseq
        %v467 = vshrl.u32 %v466, 7
        %v468 = vsub.s32 %v465, %v467
        %v469 = vrot.slane %v455, %v468
        %v470 = vcombine.high %v447, 0.0
        %v471 = vcombine.high %v454, 0.0
        %v472 = vcombine.high %v462, 0.0
        %v473 = vcombine.high %v469, 0.0
        %v474 = vcombine.high %v424, 0.0
        %v476 = vunpack.c.l.s4 1983009808
        %v477 = vunpack.c.0.s8 %v476
        %v478 = vlaneseq
        %v479 = vshrl.u32 %v478, 7
        %v480 = vsub.s32 %v477, %v479
        %v481 = vrot.slane %v424, %v480
        %v483 = vunpack.c.l.s4 1983009808
        %v484 = vunpack.c.0.s8 %v483
        %v485 = vlaneseq
        %v486 = vshrl.u32 %v485, 7
        %v487 = vsub.s32 %v484, %v486
        %v488 = vrot.slane %v474, %v487
        %v489 = vcombine.high %v481, 0.0
        %v491 = vunpack.c.l.s4 1934713408
        %v492 = vunpack.c.0.s8 %v491
        %v493 = vlaneseq
        %v494 = vshrl.u32 %v493, 7
        %v495 = vsub.s32 %v492, %v494
        %v496 = vrot.slane %v481, %v495
        %v498 = vunpack.c.l.s4 1934713408
        %v499 = vunpack.c.0.s8 %v498
        %v500 = vlaneseq
        %v501 = vshrl.u32 %v500, 7
        %v502 = vsub.s32 %v499, %v501
        %v503 = vrot.slane %v489, %v502
        %v504 = vcombine.high %v488, 0.0
        %v506 = vunpack.c.l.s4 1934713408
        %v507 = vunpack.c.0.s8 %v506
        %v508 = vlaneseq
        %v509 = vshrl.u32 %v508, 7
        %v510 = vsub.s32 %v507, %v509
        %v511 = vrot.slane %v488, %v510
        %v513 = vunpack.c.l.s4 1934713408
        %v514 = vunpack.c.0.s8 %v513
        %v515 = vlaneseq
        %v516 = vshrl.u32 %v515, 7
        %v517 = vsub.s32 %v514, %v516
        %v518 = vrot.slane %v504, %v517
        %v519 = vcombine.high %v496, 0.0
        %v520 = vcombine.high %v503, 0.0
        %v521 = vcombine.high %v511, 0.0
        %v522 = vcombine.high %v518, 0.0
        %524 = vrot.lane.b32.xlu0 %v470, 8
        %v525 = vpop.permute.xlu0 %524
        %528 = vrot.lane.b32.xlu0 %v454, 16
        %v529 = vpop.permute.xlu0 %528
        %532 = vrot.lane.b32.xlu0 %v471, 24
        %v533 = vpop.permute.xlu0 %532
        %536 = vrot.lane.b32.xlu0 %v462, 32
        %v537 = vpop.permute.xlu0 %536
        %540 = vrot.lane.b32.xlu0 %v472, 40
        %v541 = vpop.permute.xlu0 %540
        %544 = vrot.lane.b32.xlu0 %v469, 48
        %v545 = vpop.permute.xlu0 %544
        %548 = vrot.lane.b32.xlu0 %v473, 56
        %v549 = vpop.permute.xlu0 %548
        %552 = vrot.lane.b32.xlu0 %v496, 64
        %v553 = vpop.permute.xlu0 %552
        %556 = vrot.lane.b32.xlu0 %v519, 72
        %v557 = vpop.permute.xlu0 %556
        %560 = vrot.lane.b32.xlu0 %v503, 80
        %v561 = vpop.permute.xlu0 %560
        %564 = vrot.lane.b32.xlu0 %v520, 88
        %v565 = vpop.permute.xlu0 %564
        %568 = vrot.lane.b32.xlu0 %v511, 96
        %v569 = vpop.permute.xlu0 %568
        %572 = vrot.lane.b32.xlu0 %v521, 104
        %v573 = vpop.permute.xlu0 %572
        %576 = vrot.lane.b32.xlu0 %v518, 112
        %v577 = vpop.permute.xlu0 %576
        %580 = vrot.lane.b32.xlu0 %v522, 120
        %v581 = vpop.permute.xlu0 %580
        %v583 = vsel %vm202, %v447, %v525
        %v584 = vsel %vm353, %v583, %v529
        %vm585 = vcmask 195584
        %v586 = vsel %vm585, %v584, %v533
        %vm587 = vcmask 261120
        %v588 = vsel %vm587, %v586, %v537
        %vm589 = vcmask 326656
        %v590 = vsel %vm589, %v588, %v541
        %vm591 = vcmask 392192
        %v592 = vsel %vm591, %v590, %v545
        %vm593 = vcmask 457728
        %v594 = vsel %vm593, %v592, %v549
        %vm595 = vcmask 523264
        %v596 = vsel %vm595, %v594, %v553
        %vm597 = vcmask 588800
        %v598 = vsel %vm597, %v596, %v557
        %vm599 = vcmask 654336
        %v600 = vsel %vm599, %v598, %v561
        %vm601 = vcmask 719872
        %v602 = vsel %vm601, %v600, %v565
        %vm603 = vcmask 785408
        %v604 = vsel %vm603, %v602, %v569
        %vm605 = vcmask 850944
        %v606 = vsel %vm605, %v604, %v573
        %vm607 = vcmask 916480
        %v608 = vsel %vm607, %v606, %v577
        %vm609 = vcmask 982016
        %v610 = vsel %vm609, %v608, %v581
        %611 = vst [vmem:[%s162] sm:$0x1] %v610
        %s612 = sand.u32 %s93, 1
        %s613 = scalar_lea.sflag [#allocation3], %s612
        %s614 = sand.u32 %s93, 1
        %s615 = scalar_lea.vmem [#allocation2], %s614
        // Predicated region
        $region33: #{tpu_custom_call.1} parent=31 // pred_check
          %p616 = pneg %p103
        $region34: #{tpu_custom_call.1} parent=31 // pred_check_branch
          %618 = sbr.rel (%p616) target = $region36
        $region35: #{tpu_custom_call.1} parent=31 // pred_region
          %s620 = ssub.s32 16, 16
          %621 = vsyncadd %s613, %s620
          %s622 = smul.addr %s17, 16
          %s623 = scalar_lea.hbm %s3, %s622
          %s625 = sshll.u32 %s615, 4
          %s626 = int_to_ptr.vmem [resolvable:$true] %s625
          %628 = dma.vmem_to_hbm [thread:$0]  %s626, 16, %s623, %s613
        $region36: #{tpu_custom_call.1} parent=31 // pred_fallthru
          _
      $region32: #{tpu_custom_call.1} parent=5 // pred_fallthru
        _
      %p629 = scmp.le.s32.totalorder 2, %s12
      // Predicated region
      $region37: #{tpu_custom_call.1} parent=5 // pred_check
        %p630 = pneg %p629
      $region38: #{tpu_custom_call.1} parent=5 // pred_check_branch
        %632 = sbr.rel (%p630) target = $region40
      $region39: #{tpu_custom_call.1} parent=5 // pred_region
        %s633 = ssub.s32 %s12, 2
        // Predicated region
        $region41: #{tpu_custom_call.1} parent=39 // pred_check
          %p634 = pneg %p109
        $region42: #{tpu_custom_call.1} parent=39 // pred_check_branch
          %636 = sbr.rel (%p634) target = $region44
        $region43: #{tpu_custom_call.1} parent=39 // pred_region
          %s637 = sand.u32 %s94, 1
          %s638 = scalar_lea.sflag [#allocation3], %s637
          %s639 = sand.u32 %s94, 1
          %s640 = scalar_lea.vmem [#allocation2], %s639
          %641 = dma.done %s638, 16
        $region44: #{tpu_custom_call.1} parent=39 // pred_fallthru
          _
      $region40: #{tpu_custom_call.1} parent=5 // pred_fallthru
        _
    $region6: #{tpu_custom_call.1} parent=1 // loop_footer
      %s16 = sadd.s32 1, %s12
    $region7: #{tpu_custom_call.1} parent=1 // loop_footer_branch
      %11 = sbr.rel target = $region3
    $region8: #{tpu_custom_call.1} parent=1 // loop_exit
      _
    %642 = vsyncpa [#allocation3], 1
    %s643 = scalar_lea.sflag [#allocation3], 1
    %644 = vsyncpa %s643, 1

// kernel: tpu_custom_call.1
$region0: #{tpu_custom_call.1}
  #allocation0 [shape = 'u32[]', space=smem, size = 0x4, offset = 0x4, fixed_abs, tag = 'smem constant byte address 0x4 - core index']
  #allocation1 [shape = 'u32[144,128]{1,0:T(1,128)}', space=vmem, size = 0x12000, scoped, tag = 'internal scratch']
  %s0 = inlined_call_operand.vmem [shape: f32[2,18,4], index: 0, kind: input, shape index: {}]
  %s1 = inlined_call_operand.vmem [shape: f32[12,24], index: 1, kind: input, shape index: {}]
  %s2 = inlined_call_operand.vmem [shape: f32[1,24], index: 2, kind: input, shape index: {}]
  %s3 = inlined_call_operand.hbm [shape: f32[2,1,128], index: 3, kind: output, shape index: {}]
  %s4 = sld [smem:[#allocation0]]
  $region45: #{tpu_custom_call.1} parent=0
    _
  %s6 = ssub.s32 1, %s4
  %s7 = scalar_select 0, %s6, %s4
  $region1: #{tpu_custom_call.1} parent=0
    #allocation2 [shape = 'u8[1024]{0}', space=vmem, size = 0x400, scoped, tag = 'output window, operand 0']
    #allocation3 [shape = 's32[2]{0}', space=sflag, size = 0x8, scoped, tag = 'scoped memory for tpu_custom_call.1']
    %8 = vsyncpa [#allocation3], 0
    %s9 = scalar_lea.sflag [#allocation3], 1
    %10 = vsyncpa %s9, 0
    loop: start=0, step=1, limit=4
    $region2: #{tpu_custom_call.1} parent=1 // loop_pre_header
      _
    $region3: #{tpu_custom_call.1} parent=1 // loop_header
      %s12 = sphi 0, %s16
      %p13 = scmp.ge.s32.totalorder %s12, 4
      %s22 = sphi 0, %s24
      %s25 = sphi 0, %s22
      %s26 = sphi 0, %s25
      %s42 = sphi 0, %s26
      %s46 = sphi 0, %s46
      %s48 = sphi 0, %s46
      %s49 = sphi 0, %s48
      %s63 = sphi 0, %s49
      %s67 = sphi 0, %s67
      %s69 = sphi 0, %s67
      %s70 = sphi 0, %s69
      %s84 = sphi 0, %s70
      %s90 = sphi 0, %s92
      %s93 = sphi 0, %s90
      %s94 = sphi 0, %s93
      %s110 = sphi 0, %s94
    $region4: #{tpu_custom_call.1} parent=1 // loop_header_branch
      %15 = sbr.rel (%p13) target = $region8
    $region5: #{tpu_custom_call.1} parent=1 // loop_body
      %s17 = ssub.s32 %s12, 1
      %s18 = ssub.s32 %s12, 2
      %s19 = sadd.s32 %s12, 1
      %s20 = ssub.s32 %s12, %s19
      %p21 = scmp.eq.s32.totalorder %s20, 0
      %s23 = sadd.s32 %s22, 1
      %s24 = scalar_select %p21, %s22, %s23
      %p27 = pneg %p21
      %p28 = scmp.eq.s32.totalorder %s12, 1
      %p29 = por %p27, %p28
      %p30 = scmp.ne.s32.totalorder %s22, %s25
      %p31 = scmp.eq.s32.totalorder %s12, 0
      %p32 = por %p30, %p31
      %p33 = scmp.ne.s32.totalorder %s22, %s25
      %p34 = scmp.eq.s32.totalorder %s17, 1
      %p35 = por %p33, %p34
      %p36 = scmp.ne.s32.totalorder %s25, %s26
      %p37 = scmp.eq.s32.totalorder %s17, 0
      %p38 = por %p36, %p37
      %p39 = scmp.ne.s32.totalorder %s25, %s26
      %p40 = scmp.eq.s32.totalorder %s18, 1
      %p41 = por %p39, %p40
      %p43 = scmp.ne.s32.totalorder %s26, %s42
      %p44 = scmp.eq.s32.totalorder %s18, 0
      %p45 = por %p43, %p44
      %s47 = sadd.s32 %s46, 1
      %p50 = scmp.eq.s32.totalorder %s12, 1
      %p51 = scmp.ne.s32.totalorder %s46, %s48
      %p52 = scmp.eq.s32.totalorder %s12, 0
      %p53 = por %p51, %p52
      %p54 = scmp.ne.s32.totalorder %s46, %s48
      %p55 = scmp.eq.s32.totalorder %s17, 1
      %p56 = por %p54, %p55
      %p57 = scmp.ne.s32.totalorder %s48, %s49
      %p58 = scmp.eq.s32.totalorder %s17, 0
      %p59 = por %p57, %p58
      %p60 = scmp.ne.s32.totalorder %s48, %s49
      %p61 = scmp.eq.s32.totalorder %s18, 1
      %p62 = por %p60, %p61
      %p64 = scmp.ne.s32.totalorder %s49, %s63
      %p65 = scmp.eq.s32.totalorder %s18, 0
      %p66 = por %p64, %p65
      %s68 = sadd.s32 %s67, 1
      %p71 = scmp.eq.s32.totalorder %s12, 1
      %p72 = scmp.ne.s32.totalorder %s67, %s69
      %p73 = scmp.eq.s32.totalorder %s12, 0
      %p74 = por %p72, %p73
      %p75 = scmp.ne.s32.totalorder %s67, %s69
      %p76 = scmp.eq.s32.totalorder %s17, 1
      %p77 = por %p75, %p76
      %p78 = scmp.ne.s32.totalorder %s69, %s70
      %p79 = scmp.eq.s32.totalorder %s17, 0
      %p80 = por %p78, %p79
      %p81 = scmp.ne.s32.totalorder %s69, %s70
      %p82 = scmp.eq.s32.totalorder %s18, 1
      %p83 = por %p81, %p82
      %p85 = scmp.ne.s32.totalorder %s70, %s84
      %p86 = scmp.eq.s32.totalorder %s18, 0
      %p87 = por %p85, %p86
      %s88 = ssub.s32 %s12, %s19
      %p89 = scmp.eq.s32.totalorder %s88, 0
      %s91 = sadd.s32 %s90, 1
      %s92 = scalar_select %p89, %s90, %s91
      %p95 = pneg %p89
      %p96 = scmp.eq.s32.totalorder %s12, 1
      %p97 = por %p95, %p96
      %p98 = scmp.ne.s32.totalorder %s90, %s93
      %p99 = scmp.eq.s32.totalorder %s12, 0
      %p100 = por %p98, %p99
      %p101 = scmp.ne.s32.totalorder %s90, %s93
      %p102 = scmp.eq.s32.totalorder %s17, 1
      %p103 = por %p101, %p102
      %p104 = scmp.ne.s32.totalorder %s93, %s94
      %p105 = scmp.eq.s32.totalorder %s17, 0
      %p106 = por %p104, %p105
      %p107 = scmp.ne.s32.totalorder %s93, %s94
      %p108 = scmp.eq.s32.totalorder %s18, 1
      %p109 = por %p107, %p108
      %p111 = scmp.ne.s32.totalorder %s94, %s110
      %p112 = scmp.eq.s32.totalorder %s18, 0
      %p113 = por %p111, %p112
      %p114 = scmp.le.s32.totalorder 1, %s12
      %p115 = scmp.lt.s32.totalorder %s12, 3
      %p116 = pnand %p114, %p115
      %p117 = pneg %p116
      // Predicated region
      $region9: #{tpu_custom_call.1} parent=5 // pred_check
        _
      $region10: #{tpu_custom_call.1} parent=5 // pred_check_branch
        %119 = sbr.rel (%p116) target = $region12
      $region11: #{tpu_custom_call.1} parent=5 // pred_region
        %s120 = ssub.s32 %s12, 1
        // Predicated region
        $region13: #{tpu_custom_call.1} parent=11 // pred_check
          %p121 = pneg %p59
        $region14: #{tpu_custom_call.1} parent=11 // pred_check_branch
          %123 = sbr.rel (%p121) target = $region16
        $region15: #{tpu_custom_call.1} parent=11 // pred_region
          _
        $region16: #{tpu_custom_call.1} parent=11 // pred_fallthru
          _
        // Predicated region
        $region17: #{tpu_custom_call.1} parent=11 // pred_check
          %p124 = pneg %p80
        $region18: #{tpu_custom_call.1} parent=11 // pred_check_branch
          %126 = sbr.rel (%p124) target = $region20
        $region19: #{tpu_custom_call.1} parent=11 // pred_region
          _
        $region20: #{tpu_custom_call.1} parent=11 // pred_fallthru
          _
      $region12: #{tpu_custom_call.1} parent=5 // pred_fallthru
        _
      %p127 = scmp.lt.s32.totalorder %s12, 2
      // Predicated region
      $region21: #{tpu_custom_call.1} parent=5 // pred_check
        %p128 = pneg %p127
      $region22: #{tpu_custom_call.1} parent=5 // pred_check_branch
        %130 = sbr.rel (%p128) target = $region24
      $region23: #{tpu_custom_call.1} parent=5 // pred_region
        // Predicated region
        $region25: #{tpu_custom_call.1} parent=23 // pred_check
          %p131 = pneg %p32
        $region26: #{tpu_custom_call.1} parent=23 // pred_check_branch
          %133 = sbr.rel (%p131) target = $region28
        $region27: #{tpu_custom_call.1} parent=23 // pred_region
          %p134 = scmp.lt.s32.totalorder %s12, 1
          %s135 = scalar_select %p134, %s12, 1
          %s136 = smul.addr %s135, 3
          %s137 = smul.addr %s136, 8
          %s138 = scalar_lea.vmem %s0, %s137
        $region28: #{tpu_custom_call.1} parent=23 // pred_fallthru
          _
      $region24: #{tpu_custom_call.1} parent=5 // pred_fallthru
        _
      %p139 = scmp.le.s32.totalorder 1, %s12
      %p140 = scmp.lt.s32.totalorder %s12, 3
      %p141 = pnand %p139, %p140
      %p142 = pneg %p141
      // Predicated region
      $region29: #{tpu_custom_call.1} parent=5 // pred_check
        _
      $region30: #{tpu_custom_call.1} parent=5 // pred_check_branch
        %144 = sbr.rel (%p141) target = $region32
      $region31: #{tpu_custom_call.1} parent=5 // pred_region
        %s145 = ssub.s32 %s12, 1
        %p146 = scmp.lt.s32.totalorder %s17, 1
        %s147 = scalar_select %p146, %s17, 1
        %s148 = smul.addr %s147, 3
        %s149 = smul.addr %s148, 8
        %s150 = scalar_lea.vmem %s0, %s149
        %p151 = pneg %p38
        %p152 = pneg %p35
        %p153 = pneg %p59
        %p154 = pneg %p56
        %p155 = pneg %p80
        %p156 = pneg %p77
        %p157 = pneg %p106
        %p158 = pneg %p103
        %s159 = sand.u32 %s93, 1
        %s160 = scalar_lea.sflag [#allocation3], %s159
        %s161 = sand.u32 %s93, 1
        %s162 = scalar_lea.vmem [#allocation2], %s161
        %p163 = scmp.lt.s32.totalorder %s17, 1
        %s164 = scalar_select %p163, %s17, 1
        %s165 = smul.addr %s164, 3
        %s166 = smul.addr %s165, 8
        %s167 = scalar_lea.vmem %s0, %s166
        %v169 = vld [vmem:[%s167] sm:$0xff]
        %v170 = vld [vmem:[%s167 + $0x8] sm:$0xff]
        %v171 = vld [vmem:[%s167 + $0x10] sm:$0x3]
        %vm175 = vcmask 1046528
        %v176 = vrot.slane %v169, 1
        %v177 = vrot.slane %v170, 1
        %v178 = vsel %vm175, %v176, %v177
        %v179 = vrot.slane %v171, 1
        %v180 = vsel %vm175, %v177, %v179
        %181 = vrot.lane.b32.xlu0 %v178, 4
        %v182 = vpop.permute.xlu0 %181
        %183 = vrot.lane.b32.xlu0 %v180, 4
        %v184 = vpop.permute.xlu0 %183
        %vm187 = vcmask 1045504
        %v188 = vrot.slane %v169, 2
        %v189 = vrot.slane %v170, 2
        %v190 = vsel %vm187, %v188, %v189
        %v191 = vrot.slane %v171, 2
        %v192 = vsel %vm187, %v189, %v191
        %193 = vrot.lane.b32.xlu0 %v190, 8
        %v194 = vpop.permute.xlu0 %193
        %195 = vrot.lane.b32.xlu0 %v192, 8
        %v196 = vpop.permute.xlu0 %195
        %vm199 = vcmask 31744
        %v200 = vsel %vm199, %v169, %v182
        %v201 = vsel %vm199, %v170, %v184
        %vm202 = vcmask 64512
        %v203 = vsel %vm202, %v200, %v194
        %v204 = vsel %vm202, %v201, %v196
        %v205 = vld [vmem:[%s2] sm:$0x1]
        %v207 = vlaneseq
        %v208 = vshrl.u32 %v207, 7
        %v209 = vsub.s32 0, %v208
        %v210 = vrot.slane %v205, %v209
        %v212 = vld [vmem:[%s1] sm:$0xff]
        %v213 = vld [vmem:[%s1 + $0x8] sm:$0xf]
        %vm214 = vcmask 97280
        %v216 = vsel %vm214, %v203, 0
        %v219 = vsel %vm214, %v204, 0
        %vm221 = vcmask 1043456
        %v223 = vsel %vm221, %v213, 0
        %225 = vmatprep.subr.mxu0 0.0
        %226 = vmatpush1.msra.mxu0 %v212
        %227 = vmatprep.subr.mxu0 0.0
        %228 = vmatpush1.msra.mxu0 %v223
        %229 = vmatprep.subr.mxu0 0.0
        %230 = vmatpush1.msra.mxu0 0.0
        %231 = vmatprep.subr.mxu0 0.0
        %232 = vmatpush1.msra.mxu0 0.0
        %233 = vmatprep.subr.mxu0 0.0
        %234 = vmatpush1.msra.mxu0 0.0
        %235 = vmatprep.subr.mxu0 0.0
        %236 = vmatpush1.msra.mxu0 0.0
        %237 = vmatprep.subr.mxu0 0.0
        %238 = vmatpush1.msra.mxu0 0.0
        %239 = vmatprep.subr.mxu0 0.0
        %240 = vmatpush1.msra.mxu0 0.0
        %241 = vmatprep.subr.mxu0 0.0
        %242 = vmatpush1.msra.mxu0 0.0
        %243 = vmatprep.subr.mxu0 0.0
        %244 = vmatpush1.msra.mxu0 0.0
        %245 = vmatprep.subr.mxu0 0.0
        %246 = vmatpush1.msra.mxu0 0.0
        %247 = vmatprep.subr.mxu0 0.0
        %248 = vmatpush1.msra.mxu0 0.0
        %249 = vmatprep.subr.mxu0 0.0
        %250 = vmatpush1.msra.mxu0 0.0
        %251 = vmatprep.subr.mxu0 0.0
        %252 = vmatpush1.msra.mxu0 0.0
        %253 = vmatprep.subr.mxu0 0.0
        %254 = vmatpush1.msra.mxu0 0.0
        %255 = vmatprep.subr.mxu0 0.0
        %256 = vmatpush1.msra.mxu0 0.0
        %257 = vmatprep.subr.mxu0 0.0
        %258 = vmatpush1.msra.mxu0 0.0
        %259 = vmatprep.subr.mxu0 0.0
        %260 = vmatpush1.msra.mxu0 0.0
        %261 = vmatprep.subr.mxu0 0.0
        %262 = vmatpush1.msra.mxu0 0.0
        %263 = vmatprep.subr.mxu0 0.0
        %264 = vmatpush1.msra.mxu0 0.0
        %265 = vmatprep.subr.mxu0 0.0
        %266 = vmatpush1.msra.mxu0 0.0
        %267 = vmatprep.subr.mxu0 0.0
        %268 = vmatpush1.msra.mxu0 0.0
        %269 = vmatprep.subr.mxu0 0.0
        %270 = vmatpush1.msra.mxu0 0.0
        %271 = vmatprep.subr.mxu0 0.0
        %272 = vmatpush1.msra.mxu0 0.0
        %273 = vmatprep.subr.mxu0 0.0
        %274 = vmatpush1.msra.mxu0 0.0
        %275 = vmatprep.subr.mxu0 0.0
        %276 = vmatpush1.msra.mxu0 0.0
        %277 = vmatprep.subr.mxu0 0.0
        %278 = vmatpush1.msra.mxu0 0.0
        %279 = vmatprep.subr.mxu0 0.0
        %280 = vmatpush1.msra.mxu0 0.0
        %281 = vmatprep.subr.mxu0 0.0
        %282 = vmatpush1.msra.mxu0 0.0
        %283 = vmatprep.subr.mxu0 0.0
        %284 = vmatpush1.msra.mxu0 0.0
        %285 = vmatprep.subr.mxu0 0.0
        %286 = vmatpush1.msra.mxu0 0.0
        %287 = vmatprep.subr.mxu0 0.0
        %288 = vmatpush1.msra.mxu0 0.0
        %289 = vmatprep.mubr.f32.mxu0 0.0
        %290 = vmatmul.mubr.f32.gmra.mrb[0].mxu0 %v216
        %v291 = vpop.f32.mrb[0].mxu0
        %v292 = vadd.f32 0.0, %v291
        %v293 = vpop.f32.mrb[0].mxu0
        %294 = vmatprep.mubr.f32.mxu0 0.0
        %295 = vmatmul.mubr.f32.gmra.mrb[0].mxu0 %v219
        %v296 = vpop.f32.mrb[0].mxu0
        %v297 = vadd.f32 0.0, %v296
        %v298 = vpop.f32.mrb[0].mxu0
        %299 = vdwg.mxu0
        %v300 = vadd.f32 %v210, %v292
        %v301 = vadd.f32 %v210, %v297
        %v302 = vpack.c.bf16 %v301, %v300
        %304 = vrot.lane.b32.xlu0 %v302, 120
        %v305 = vpop.permute.xlu0 %304
        %v307 = vsel %vm202, %v302, 0
        %v310 = vsel %vm202, %v305, 0
        %312 = vmatprep.subr.bf16.mxu0 0
        %313 = vmatpush1.bf16.xpose.msra.mxu0 %v310
        %314 = vmatprep.subr.bf16.mxu0 0
        %315 = vmatpush1.bf16.xpose.msra.mxu0 0
        %316 = vmatprep.subr.bf16.mxu0 0
        %317 = vmatpush1.bf16.xpose.msra.mxu0 0
        %318 = vmatprep.subr.bf16.mxu0 0
        %319 = vmatpush1.bf16.xpose.msra.mxu0 0
        %320 = vmatprep.subr.bf16.mxu0 0
        %321 = vmatpush1.bf16.xpose.msra.mxu0 0
        %322 = vmatprep.subr.bf16.mxu0 0
        %323 = vmatpush1.bf16.xpose.msra.mxu0 0
        %324 = vmatprep.subr.bf16.mxu0 0
        %325 = vmatpush1.bf16.xpose.msra.mxu0 0
        %326 = vmatprep.subr.bf16.mxu0 0
        %327 = vmatpush1.bf16.xpose.msra.mxu0 0
        %328 = vmatprep.subr.bf16.mxu0 0
        %329 = vmatpush1.bf16.xpose.msra.mxu0 0
        %330 = vmatprep.subr.bf16.mxu0 0
        %331 = vmatpush1.bf16.xpose.msra.mxu0 0
        %332 = vmatprep.subr.bf16.mxu0 0
        %333 = vmatpush1.bf16.xpose.msra.mxu0 0
        %334 = vmatprep.subr.bf16.mxu0 0
        %335 = vmatpush1.bf16.xpose.msra.mxu0 0
        %336 = vmatprep.subr.bf16.mxu0 0
        %337 = vmatpush1.bf16.xpose.msra.mxu0 0
        %338 = vmatprep.subr.bf16.mxu0 0
        %339 = vmatpush1.bf16.xpose.msra.mxu0 0
        %340 = vmatprep.subr.bf16.mxu0 0
        %341 = vmatpush1.bf16.xpose.msra.mxu0 0
        %342 = vmatprep.subr.bf16.mxu0 0
        %343 = vmatpush1.bf16.xpose.msra.mxu0 0
        %344 = vmatprep.mubr.bf16.mxu0 0
        %345 = vmatmul.mubr.bf16.gmra.mrb[0].mxu0 %v307
        %v346 = vpop.f32.mrb[0].mxu0
        %v347 = vadd.f32 0.0, %v346
        %v348 = vpop.f32.mrb[0].mxu0
        %v349 = vpop.f32.mrb[0].mxu0
        %v350 = vadd.f32 0.0, %v349
        %v351 = vpop.f32.mrb[0].mxu0
        %352 = vdwg.mxu0
        %vm353 = vcmask 130048
        %v354 = vsel %vm353, %v347, -inf
        %355 = vmax.xlane.f32.xlu0 %v354
        %v356 = vpop.xlane.xlu0 %355
        %v357 = vsel %vm353, %v350, -inf
        %358 = vmax.xlane.f32.xlu0 %v357
        %v359 = vpop.xlane.xlu0 %358
        %v360 = vsub.f32 %v347, %v356
        %v361 = vsub.f32 %v350, %v359
        %v362 = vmul.f32 %v360, 1.442695
        %v363 = vpow.pop %v362
        %v364 = vmul.f32 %v361, 1.442695
        %v365 = vpow.pop %v364
        %v366 = vsel %vm353, %v363, 0.0
        %367 = vadd.xlane.f32.xlu0 %v366
        %v368 = vpop.xlane.xlu0 %367
        %v369 = vsel %vm353, %v365, 0.0
        %370 = vadd.xlane.f32.xlu0 %v369
        %v371 = vpop.xlane.xlu0 %370
        %v372 = vpack.c.bf16 %v365, %v363
        %373 = vrot.lane.b32.xlu0 %v302, 112
        %v374 = vpop.permute.xlu0 %373
        %v377 = vsel %vm353, %v372, 0
        %379 = vmatprep.subr.bf16.mxu0 0
        %380 = vmatpush1.bf16.msra.mxu0 %v374
        %381 = vmatprep.subr.bf16.mxu0 0
        %382 = vmatpush1.bf16.msra.mxu0 0
        %383 = vmatprep.subr.bf16.mxu0 0
        %384 = vmatpush1.bf16.msra.mxu0 0
        %385 = vmatprep.subr.bf16.mxu0 0
        %386 = vmatpush1.bf16.msra.mxu0 0
        %387 = vmatprep.subr.bf16.mxu0 0
        %388 = vmatpush1.bf16.msra.mxu0 0
        %389 = vmatprep.subr.bf16.mxu0 0
        %390 = vmatpush1.bf16.msra.mxu0 0
        %391 = vmatprep.subr.bf16.mxu0 0
        %392 = vmatpush1.bf16.msra.mxu0 0
        %393 = vmatprep.subr.bf16.mxu0 0
        %394 = vmatpush1.bf16.msra.mxu0 0
        %395 = vmatprep.subr.bf16.mxu0 0
        %396 = vmatpush1.bf16.msra.mxu0 0
        %397 = vmatprep.subr.bf16.mxu0 0
        %398 = vmatpush1.bf16.msra.mxu0 0
        %399 = vmatprep.subr.bf16.mxu0 0
        %400 = vmatpush1.bf16.msra.mxu0 0
        %401 = vmatprep.subr.bf16.mxu0 0
        %402 = vmatpush1.bf16.msra.mxu0 0
        %403 = vmatprep.subr.bf16.mxu0 0
        %404 = vmatpush1.bf16.msra.mxu0 0
        %405 = vmatprep.subr.bf16.mxu0 0
        %406 = vmatpush1.bf16.msra.mxu0 0
        %407 = vmatprep.subr.bf16.mxu0 0
        %408 = vmatpush1.bf16.msra.mxu0 0
        %409 = vmatprep.subr.bf16.mxu0 0
        %410 = vmatpush1.bf16.msra.mxu0 0
        %411 = vmatprep.mubr.bf16.mxu0 0
        %412 = vmatmul.mubr.bf16.gmra.mrb[0].mxu0 %v377
        %v413 = vpop.f32.mrb[0].mxu0
        %v414 = vadd.f32 0.0, %v413
        %v415 = vpop.f32.mrb[0].mxu0
        %v416 = vpop.f32.mrb[0].mxu0
        %v417 = vadd.f32 0.0, %v416
        %v418 = vpop.f32.mrb[0].mxu0
        %419 = vdwg.mxu0
        %v420 = vrcp.pop %v368
        %v421 = vrcp.pop %v371
        %v422 = vmul.f32 %v414, %v420
        %v423 = vmul.f32 %v417, %v421
        %v424 = vcombine.high %v422, 0.0
        %v426 = vunpack.c.l.s4 1983009808
        %v427 = vunpack.c.0.s8 %v426
        %v428 = vlaneseq
        %v429 = vshrl.u32 %v428, 7
        %v430 = vsub.s32 %v427, %v429
        %v431 = vrot.slane %v422, %v430
        %v433 = vunpack.c.l.s4 1983009808
        %v434 = vunpack.c.0.s8 %v433
        %v435 = vlaneseq
        %v436 = vshrl.u32 %v435, 7
        %v437 = vsub.s32 %v434, %v436
        %v438 = vrot.slane %v424, %v437
        %v439 = vcombine.high %v431, 0.0
        %v441 = vunpack.c.l.s4 1934713408
        %v442 = vunpack.c.0.s8 %v441
        %v443 = vlaneseq
        %v444 = vshrl.u32 %v443, 7
        %v445 = vsub.s32 %v442, %v444
        %v446 = vrot.slane %v431, %v445
        %v448 = vunpack.c.l.s4 1934713408
        %v449 = vunpack.c.0.s8 %v448
        %v450 = vlaneseq
        %v451 = vshrl.u32 %v450, 7
        %v452 = vsub.s32 %v449, %v451
        %v453 = vrot.slane %v439, %v452
        %v454 = vcombine.high %v438, 0.0
        %v456 = vunpack.c.l.s4 1934713408
        %v457 = vunpack.c.0.s8 %v456
        %v458 = vlaneseq
        %v459 = vshrl.u32 %v458, 7
        %v460 = vsub.s32 %v457, %v459
        %v461 = vrot.slane %v438, %v460
        %v463 = vunpack.c.l.s4 1934713408
        %v464 = vunpack.c.0.s8 %v463
        %v465 = vlaneseq
        %v466 = vshrl.u32 %v465, 7
        %v467 = vsub.s32 %v464, %v466
        %v468 = vrot.slane %v454, %v467
        %v469 = vcombine.high %v446, 0.0
        %v470 = vcombine.high %v453, 0.0
        %v471 = vcombine.high %v461, 0.0
        %v472 = vcombine.high %v468, 0.0
        %v473 = vcombine.high %v423, 0.0
        %v475 = vunpack.c.l.s4 1983009808
        %v476 = vunpack.c.0.s8 %v475
        %v477 = vlaneseq
        %v478 = vshrl.u32 %v477, 7
        %v479 = vsub.s32 %v476, %v478
        %v480 = vrot.slane %v423, %v479
        %v482 = vunpack.c.l.s4 1983009808
        %v483 = vunpack.c.0.s8 %v482
        %v484 = vlaneseq
        %v485 = vshrl.u32 %v484, 7
        %v486 = vsub.s32 %v483, %v485
        %v487 = vrot.slane %v473, %v486
        %v488 = vcombine.high %v480, 0.0
        %v490 = vunpack.c.l.s4 1934713408
        %v491 = vunpack.c.0.s8 %v490
        %v492 = vlaneseq
        %v493 = vshrl.u32 %v492, 7
        %v494 = vsub.s32 %v491, %v493
        %v495 = vrot.slane %v480, %v494
        %v497 = vunpack.c.l.s4 1934713408
        %v498 = vunpack.c.0.s8 %v497
        %v499 = vlaneseq
        %v500 = vshrl.u32 %v499, 7
        %v501 = vsub.s32 %v498, %v500
        %v502 = vrot.slane %v488, %v501
        %v503 = vcombine.high %v487, 0.0
        %v505 = vunpack.c.l.s4 1934713408
        %v506 = vunpack.c.0.s8 %v505
        %v507 = vlaneseq
        %v508 = vshrl.u32 %v507, 7
        %v509 = vsub.s32 %v506, %v508
        %v510 = vrot.slane %v487, %v509
        %v512 = vunpack.c.l.s4 1934713408
        %v513 = vunpack.c.0.s8 %v512
        %v514 = vlaneseq
        %v515 = vshrl.u32 %v514, 7
        %v516 = vsub.s32 %v513, %v515
        %v517 = vrot.slane %v503, %v516
        %v518 = vcombine.high %v495, 0.0
        %v519 = vcombine.high %v502, 0.0
        %v520 = vcombine.high %v510, 0.0
        %v521 = vcombine.high %v517, 0.0
        %523 = vrot.lane.b32.xlu0 %v469, 8
        %v524 = vpop.permute.xlu0 %523
        %527 = vrot.lane.b32.xlu0 %v453, 16
        %v528 = vpop.permute.xlu0 %527
        %531 = vrot.lane.b32.xlu0 %v470, 24
        %v532 = vpop.permute.xlu0 %531
        %535 = vrot.lane.b32.xlu0 %v461, 32
        %v536 = vpop.permute.xlu0 %535
        %539 = vrot.lane.b32.xlu0 %v471, 40
        %v540 = vpop.permute.xlu0 %539
        %543 = vrot.lane.b32.xlu0 %v468, 48
        %v544 = vpop.permute.xlu0 %543
        %547 = vrot.lane.b32.xlu0 %v472, 56
        %v548 = vpop.permute.xlu0 %547
        %551 = vrot.lane.b32.xlu0 %v495, 64
        %v552 = vpop.permute.xlu0 %551
        %555 = vrot.lane.b32.xlu0 %v518, 72
        %v556 = vpop.permute.xlu0 %555
        %559 = vrot.lane.b32.xlu0 %v502, 80
        %v560 = vpop.permute.xlu0 %559
        %563 = vrot.lane.b32.xlu0 %v519, 88
        %v564 = vpop.permute.xlu0 %563
        %567 = vrot.lane.b32.xlu0 %v510, 96
        %v568 = vpop.permute.xlu0 %567
        %571 = vrot.lane.b32.xlu0 %v520, 104
        %v572 = vpop.permute.xlu0 %571
        %575 = vrot.lane.b32.xlu0 %v517, 112
        %v576 = vpop.permute.xlu0 %575
        %579 = vrot.lane.b32.xlu0 %v521, 120
        %v580 = vpop.permute.xlu0 %579
        %v582 = vsel %vm202, %v446, %v524
        %v583 = vsel %vm353, %v582, %v528
        %vm584 = vcmask 195584
        %v585 = vsel %vm584, %v583, %v532
        %vm586 = vcmask 261120
        %v587 = vsel %vm586, %v585, %v536
        %vm588 = vcmask 326656
        %v589 = vsel %vm588, %v587, %v540
        %vm590 = vcmask 392192
        %v591 = vsel %vm590, %v589, %v544
        %vm592 = vcmask 457728
        %v593 = vsel %vm592, %v591, %v548
        %vm594 = vcmask 523264
        %v595 = vsel %vm594, %v593, %v552
        %vm596 = vcmask 588800
        %v597 = vsel %vm596, %v595, %v556
        %vm598 = vcmask 654336
        %v599 = vsel %vm598, %v597, %v560
        %vm600 = vcmask 719872
        %v601 = vsel %vm600, %v599, %v564
        %vm602 = vcmask 785408
        %v603 = vsel %vm602, %v601, %v568
        %vm604 = vcmask 850944
        %v605 = vsel %vm604, %v603, %v572
        %vm606 = vcmask 916480
        %v607 = vsel %vm606, %v605, %v576
        %vm608 = vcmask 982016
        %v609 = vsel %vm608, %v607, %v580
        %610 = vst [vmem:[%s162] sm:$0x1] %v609
        %s611 = sand.u32 %s93, 1
        %s612 = scalar_lea.sflag [#allocation3], %s611
        %s613 = sand.u32 %s93, 1
        %s614 = scalar_lea.vmem [#allocation2], %s613
        // Predicated region
        $region33: #{tpu_custom_call.1} parent=31 // pred_check
          %p615 = pneg %p103
        $region34: #{tpu_custom_call.1} parent=31 // pred_check_branch
          %617 = sbr.rel (%p615) target = $region36
        $region35: #{tpu_custom_call.1} parent=31 // pred_region
          %s619 = ssub.s32 16, 16
          %620 = vsyncadd %s612, %s619
          %s621 = smul.addr %s17, 16
          %s622 = scalar_lea.hbm %s3, %s621
          %s624 = sshll.u32 %s614, 4
          %s625 = int_to_ptr.vmem [resolvable:$true] %s624
          %627 = dma.vmem_to_hbm [thread:$0]  %s625, 16, %s622, %s612
        $region36: #{tpu_custom_call.1} parent=31 // pred_fallthru
          _
      $region32: #{tpu_custom_call.1} parent=5 // pred_fallthru
        _
      %p628 = scmp.le.s32.totalorder 2, %s12
      // Predicated region
      $region37: #{tpu_custom_call.1} parent=5 // pred_check
        %p629 = pneg %p628
      $region38: #{tpu_custom_call.1} parent=5 // pred_check_branch
        %631 = sbr.rel (%p629) target = $region40
      $region39: #{tpu_custom_call.1} parent=5 // pred_region
        %s632 = ssub.s32 %s12, 2
        // Predicated region
        $region41: #{tpu_custom_call.1} parent=39 // pred_check
          %p633 = pneg %p109
        $region42: #{tpu_custom_call.1} parent=39 // pred_check_branch
          %635 = sbr.rel (%p633) target = $region44
        $region43: #{tpu_custom_call.1} parent=39 // pred_region
          %s636 = sand.u32 %s94, 1
          %s637 = scalar_lea.sflag [#allocation3], %s636
          %s638 = sand.u32 %s94, 1
          %s639 = scalar_lea.vmem [#allocation2], %s638
          %640 = dma.done %s637, 16
        $region44: #{tpu_custom_call.1} parent=39 // pred_fallthru
          _
      $region40: #{tpu_custom_call.1} parent=5 // pred_fallthru
        _
    $region6: #{tpu_custom_call.1} parent=1 // loop_footer
      %s16 = sadd.s32 1, %s12
    $region7: #{tpu_custom_call.1} parent=1 // loop_footer_branch
      %11 = sbr.rel target = $region3
    $region8: #{tpu_custom_call.1} parent=1 // loop_exit
      _
    %641 = vsyncpa [#allocation3], 1
    %s642 = scalar_lea.sflag [#allocation3], 1
    %643 = vsyncpa %s642, 1

</llo_original>
